<compile_context>
chip_gen: v5e
topology: v5e:2x2
jax: 0.10.0
libtpu: 0.0.40
codegen_flags: <defaults>
</compile_context>

<pallas_src>
import functools

import jax
import jax.numpy as jnp
from jax.experimental import pallas as pl
from jax.experimental.pallas import tpu as pltpu

LANES = 128


def _round_up(x, m):
    return (x + m - 1) // m * m


def _vmem_limit_bytes():
    """Scoped-VMEM limit derived from the actual chip, with a conservative fallback."""
    try:
        cap = int(pltpu.get_tpu_info().vmem_capacity_bytes)
    except Exception:
        cap = 64 * 1024 * 1024  # v7x per-core physical VMEM (smallest generation)
    return min(cap * 3 // 4, 96 * 1024 * 1024)


def _pick_row_tile(Ho, Wo, per_row_bytes, fixed_bytes, budget_bytes):
    """Largest TH (multiple of 8, capped) with TH*Wo >= 512 when the budget allows."""
    cap = min(64, _round_up(Ho, 8))
    th = 8
    while th < cap and th * Wo < 512:
        th += 8
    while th > 8 and fixed_bytes + th * per_row_bytes > budget_bytes:
        th -= 8
    return th


# ----------------------------------------------------------------------------------
# General (channel-rich) path: lane-padded NHWC + manual double-buffered halo-row DMA
# ----------------------------------------------------------------------------------
def _conv_bn_relu_general_kernel(x_hbm, w_ref, s_ref, b_ref, o_ref, x_buf, sem,
                                 *, K, stride, TH, TH_IN):
    """One (batch, cout-tile, row-tile) block per grid step.

    x_hbm : (N, Hp_pad, Wp, Cin_p)   zero-padded input, resident in HBM (pl.ANY)
    w_ref : (K, K*Cin_p, TCout)      per-dy im2col weights (bf16); resident across rows
    s_ref : (1, TCout)               folded BN scale (f32)
    b_ref : (1, TCout)               folded BN bias  (f32)
    o_ref : (1, TH, Wo, TCout)       output tile
    x_buf : (2, TH_IN, Wp, Cin_p)    double-buffered input row windows (body + halo)
    sem   : DMA semaphores, shape (2,)
    """
    n = pl.program_id(0)
    r = pl.program_id(2)
    nr = pl.num_programs(2)
    Wo = o_ref.shape[2]
    TCout = o_ref.shape[3]
    Cin_p = x_buf.shape[3]

    slot = r % 2

    def window_copy(row_tile, slot_idx):
        row0 = pl.multiple_of(row_tile * (TH * stride), TH * stride)
        return pltpu.make_async_copy(
            x_hbm.at[n, pl.ds(row0, TH_IN)], x_buf.at[slot_idx], sem.at[slot_idx])

    # Prime the pipeline at the start of every (n, cout-tile) row run.
    @pl.when(r == 0)
    def _():
        window_copy(r, slot).start()

    # Wait for the current window, then immediately kick off the prefetch of the next
    # row tile into the other slot so its DMA overlaps this step's compute.
    window_copy(r, slot).wait()

    @pl.when(r + 1 < nr)
    def _():
        window_copy(r + 1, 1 - slot).start()

    xb = x_buf[slot]                                        # (TH_IN, Wp, Cin_p) bf16

    # K per-dy MXU contractions of depth K*Cin_p with f32 accumulation: Kx smaller
    # materialized im2col tile than one K*K*Cin_p-deep contraction (v7x VMEM-safe),
    # while each matmul stays deep enough to keep the MXU busy.
    acc = jnp.zeros((TH * Wo, TCout), jnp.float32)
    for dy in range(K):
        rows = xb[dy:dy + (TH - 1) * stride + 1:stride]               # (TH, Wp, Cin_p)
        pieces = [rows[:, dx:dx + (Wo - 1) * stride + 1:stride, :]    # (TH, Wo, Cin_p)
                  for dx in range(K)]
        lhs = jnp.concatenate(pieces, axis=-1).reshape(TH * Wo, K * Cin_p)
        acc = acc + jnp.dot(lhs, w_ref[dy], preferred_element_type=jnp.float32)

    # Fused BN (eval) affine + ReLU epilogue.
    y = acc * s_ref[...] + b_ref[...]
    o_ref[0] = jnp.maximum(y, 0.0).reshape(TH, Wo, TCout).astype(o_ref.dtype)


# ----------------------------------------------------------------------------------
# Small-channel (stem) path: wrapper-side im2col, lane dim = K*K*Cin (no 128-pad of Cin)
# ----------------------------------------------------------------------------------
def _matmul_bn_relu_kernel(x_ref, w_ref, s_ref, b_ref, o_ref):
    """x_ref: (1, TH, Wo, CKK_p) im2col block; w_ref: (CKK_p, TCout)."""
    TH, Wo, CKK_p = x_ref.shape[1], x_ref.shape[2], x_ref.shape[3]
    TCout = o_ref.shape[3]
    lhs = x_ref[0].reshape(TH * Wo, CKK_p)
    y = jnp.dot(lhs, w_ref[...], preferred_element_type=jnp.float32)
    y = y * s_ref[...] + b_ref[...]
    o_ref[0] = jnp.maximum(y, 0.0).reshape(TH, Wo, TCout).astype(o_ref.dtype)


@functools.partial(jax.jit, static_argnames=("stride", "force_general", "out_dtype"))
def conv_bn_relu(x_nchw, weight_oihw, bn_scale, bn_bias, *, stride=1,
                 force_general=False, out_dtype=jnp.float32):
    """Forward of the `convolution` module.

    x_nchw      : (N, Cin, H, W)    float32
    weight_oihw : (Cout, Cin, K, K) float32  (PyTorch Conv2d layout)
    bn_scale    : (Cout,)  folded BN scale (gamma / sqrt(var + eps))
    bn_bias     : (Cout,)  folded BN bias  (beta - mean*scale, or conv bias if no BN)
    returns     : (N, Cout, Ho, Wo) in `out_dtype` (f32 default, matching PyTorch)
    """
    N, Cin, H, W = x_nchw.shape
    Cout, _, K, _ = weight_oihw.shape
    pad = (K - 1) // 2
    Hp, Wp = H + 2 * pad, W + 2 * pad
    Ho = (H + 2 * pad - K) // stride + 1
    Wo = (W + 2 * pad - K) // stride + 1

    Cout_p = _round_up(Cout, LANES)
    TCout = 256 if Cout_p >= 256 else 128      # fill the 256-wide MXU on v6e/v7x
    vmem_limit = _vmem_limit_bytes()
    budget = min(32 * 1024 * 1024, vmem_limit // 2)

    s2 = jnp.pad(bn_scale, (0, Cout_p - Cout)).reshape(1, Cout_p).astype(jnp.float32)
    b2 = jnp.pad(bn_bias, (0, Cout_p - Cout)).reshape(1, Cout_p).astype(jnp.float32)

    x_nhwc = jnp.transpose(x_nchw, (0, 2, 3, 1))

    use_small_channel_path = (Cin <= 32) and not force_general

    if use_small_channel_path:
        # ---- stem path: im2col in the wrapper, kernel is a pipelined matmul --------
        CKK = K * K * Cin
        CKK_p = _round_up(CKK, LANES)
        per_row = 2 * Wo * CKK_p * 2 + 3 * Wo * TCout * 4
        fixed = 2 * CKK_p * TCout * 2
        TH = _pick_row_tile(Ho, Wo, per_row, fixed, budget)
        Ho_p = _round_up(Ho, TH)
        Hp_need = (Ho_p - 1) * stride + K

        x_pad = jnp.pad(x_nhwc, ((0, 0), (pad, pad + max(0, Hp_need - Hp)),
                                 (pad, pad), (0, 0)))
        cols = []
        for dy in range(K):
            for dx in range(K):
                cols.append(x_pad[:, dy:dy + (Ho_p - 1) * stride + 1:stride,
                                  dx:dx + (Wo - 1) * stride + 1:stride, :])
        xcol = jnp.concatenate(cols, axis=-1)                     # (N, Ho_p, Wo, K*K*Cin)
        xcol = jnp.pad(xcol, ((0, 0), (0, 0), (0, 0),
                              (0, CKK_p - CKK))).astype(jnp.bfloat16)

        w = jnp.transpose(weight_oihw, (2, 3, 1, 0)).reshape(CKK, Cout)
        w = jnp.pad(w, ((0, CKK_p - CKK), (0, Cout_p - Cout))).astype(jnp.bfloat16)

        grid = (N, Cout_p // TCout, Ho_p // TH)     # weights constant across innermost r
        out_nhwc = pl.pallas_call(
            _matmul_bn_relu_kernel,
            out_shape=jax.ShapeDtypeStruct((N, Ho_p, Wo, Cout_p), out_dtype),
            grid=grid,
            in_specs=[
                pl.BlockSpec((1, TH, Wo, CKK_p), lambda n, c, r: (n, r, 0, 0)),
                pl.BlockSpec((CKK_p, TCout), lambda n, c, r: (0, c)),
                pl.BlockSpec((1, TCout), lambda n, c, r: (0, c)),
                pl.BlockSpec((1, TCout), lambda n, c, r: (0, c)),
            ],
            out_specs=pl.BlockSpec((1, TH, Wo, TCout), lambda n, c, r: (n, r, 0, c)),
            compiler_params=pltpu.CompilerParams(
                dimension_semantics=("parallel", "parallel", "arbitrary"),
                vmem_limit_bytes=vmem_limit,
            ),
        )(xcol, w, s2, b2)
    else:
        # ---- general path: lane-padded channels + manual double-buffered halo DMA --
        Cin_p = _round_up(Cin, LANES)
        per_row = (2 * stride * Wp * Cin_p * 2        # x window rows (double-buffered)
                   + 3 * Wo * K * Cin_p * 2           # im2col lhs + pieces (bf16)
                   + 3 * Wo * TCout * 4)              # f32 acc + output double buffer
        fixed = 2 * K * Wp * Cin_p * 2 + 2 * K * K * Cin_p * TCout * 2
        TH = _pick_row_tile(Ho, Wo, per_row, fixed, budget)
        TH_IN = (TH - 1) * stride + K
        Ho_p = _round_up(Ho, TH)
        Hp_need = (Ho_p - 1) * stride + K

        x_pad = jnp.pad(
            x_nhwc, ((0, 0), (pad, pad + max(0, Hp_need - Hp)),
                     (pad, pad), (0, Cin_p - Cin))).astype(jnp.bfloat16)

        w = jnp.transpose(weight_oihw, (2, 3, 1, 0))              # (K, K, Cin, Cout)
        w = jnp.pad(w, ((0, 0), (0, 0), (0, Cin_p - Cin), (0, Cout_p - Cout)))
        w = w.astype(jnp.bfloat16).reshape(K, K * Cin_p, Cout_p)

        grid = (N, Cout_p // TCout, Ho_p // TH)     # weights constant across innermost r
        out_nhwc = pl.pallas_call(
            functools.partial(_conv_bn_relu_general_kernel,
                              K=K, stride=stride, TH=TH, TH_IN=TH_IN),
            out_shape=jax.ShapeDtypeStruct((N, Ho_p, Wo, Cout_p), out_dtype),
            grid=grid,
            in_specs=[
                pl.BlockSpec(memory_space=pl.ANY),                 # x stays in HBM
                pl.BlockSpec((K, K * Cin_p, TCout), lambda n, c, r: (0, 0, c)),
                pl.BlockSpec((1, TCout), lambda n, c, r: (0, c)),
                pl.BlockSpec((1, TCout), lambda n, c, r: (0, c)),
            ],
            out_specs=pl.BlockSpec((1, TH, Wo, TCout), lambda n, c, r: (n, r, 0, c)),
            scratch_shapes=[
                pltpu.VMEM((2, TH_IN, Wp, Cin_p), jnp.bfloat16),   # 2-slot row windows
                pltpu.SemaphoreType.DMA((2,)),
            ],
            compiler_params=pltpu.CompilerParams(
                # Row axis carries the double-buffer slot state -> must be sequential.
                dimension_semantics=("parallel", "parallel", "arbitrary"),
                vmem_limit_bytes=vmem_limit,
            ),
        )(x_pad, w, s2, b2)

    out_nhwc = out_nhwc[:, :Ho, :, :Cout]             # crop row / channel padding
    return jnp.transpose(out_nhwc, (0, 3, 1, 2))      # back to NCHW


def _reference(x_nchw, weight_oihw, bn_scale, bn_bias, *, stride=1):
    """Pure-JAX reference (lax conv on the same bf16 inputs + folded BN + ReLU)."""
    K = weight_oihw.shape[-1]
    pad = (K - 1) // 2
    y = jax.lax.conv_general_dilated(
        x_nchw.astype(jnp.bfloat16), weight_oihw.astype(jnp.bfloat16),
        window_strides=(stride, stride),
        padding=((pad, pad), (pad, pad)),
        dimension_numbers=("NCHW", "OIHW", "NCHW"),
        preferred_element_type=jnp.float32)
    y = y * bn_scale[None, :, None, None] + bn_bias[None, :, None, None]
    return jnp.maximum(y, 0.0)


if __name__ == "__main__":
    # Module config: convolution(k=3, in_channels=4, out_channels=8, stride=1, with_bn=True)
    k, cin, cout, stride, with_bn = 3, 4, 8, 1, True
    N, H, W = 2, 16, 16
    eps = 1e-5

    key = jax.random.PRNGKey(0)
    kx, kw, kg, kb, km, kv = jax.random.split(key, 6)

    x = jax.random.normal(kx, (N, cin, H, W), jnp.float32)
    weight = jax.random.normal(kw, (cout, cin, k, k), jnp.float32) * 0.1

    # BatchNorm2d parameters / running stats (eval mode), deterministic.
    gamma = 1.0 + 0.1 * jax.random.normal(kg, (cout,), jnp.float32)
    beta = 0.1 * jax.random.normal(kb, (cout,), jnp.float32)
    running_mean = 0.1 * jax.random.normal(km, (cout,), jnp.float32)
    running_var = jax.random.uniform(kv, (cout,), jnp.float32, 0.5, 1.5)

    if with_bn:
        scale = gamma / jnp.sqrt(running_var + eps)
        bias = beta - running_mean * scale
    else:
        scale = jnp.ones((cout,), jnp.float32)   # conv would carry a bias term instead
        bias = jnp.zeros((cout,), jnp.float32)

    ref = _reference(x, weight, scale, bias, stride=stride)

    # Small-channel (stem) path — the path this tiny config actually hits.
    out_small = jax.block_until_ready(
        conv_bn_relu(x, weight, scale, bias, stride=stride))
    assert out_small.shape == (N, cout, H, W), out_small.shape
    err_small = float(jnp.max(jnp.abs(out_small - ref)))
    assert jnp.allclose(out_small, ref, atol=2e-2, rtol=2e-2), err_small

    # General (lane-padded, manual double-buffered halo-DMA) path, forced on the same
    # small input so both code paths are compiled and validated.
    out_gen = jax.block_until_ready(
        conv_bn_relu(x, weight, scale, bias, stride=stride, force_general=True))
    assert out_gen.shape == (N, cout, H, W), out_gen.shape
    err_gen = float(jnp.max(jnp.abs(out_gen - ref)))
    assert jnp.allclose(out_gen, ref, atol=2e-2, rtol=2e-2), err_gen

    print("KERNEL_OK")
</pallas_src>

<mosaic_0001>
module attributes {stable_mosaic.version = 11 : i64} {
  func.func @_matmul_bn_relu_kernel(%arg0: i32, %arg1: i32, %arg2: i32, %arg3: memref<1x16x16x128xbf16, #tpu.memory_space<vmem>>, %arg4: memref<128x128xbf16, #tpu.memory_space<vmem>>, %arg5: memref<1x128xf32, #tpu.memory_space<vmem>>, %arg6: memref<1x128xf32, #tpu.memory_space<vmem>>, %arg7: memref<1x16x16x128xf32, #tpu.memory_space<vmem>>) attributes {dimension_semantics = [#tpu.dimension_semantics<parallel>, #tpu.dimension_semantics<parallel>, #tpu.dimension_semantics<arbitrary>], iteration_bounds = array<i64: 2, 1, 1>, scalar_prefetch = 0 : i64, scratch_operands = 0 : i64, tpu.core_type = #tpu.core_type<tc>, window_params = [{transform_indices = @transform_0, window_bounds = array<i64: 1, 16, 16, 128>}, {transform_indices = @transform_1, window_bounds = array<i64: 128, 128>}, {transform_indices = @transform_2, window_bounds = array<i64: 1, 128>}, {transform_indices = @transform_3, window_bounds = array<i64: 1, 128>}, {transform_indices = @transform_4, window_bounds = array<i64: 1, 16, 16, 128>}]} {
    %c0 = arith.constant 0 : index
    %c0_0 = arith.constant 0 : index
    %c0_1 = arith.constant 0 : index
    %c0_2 = arith.constant 0 : index
    %0 = vector.load %arg3[%c0, %c0_0, %c0_1, %c0_2] : memref<1x16x16x128xbf16, #tpu.memory_space<vmem>>, vector<1x16x16x128xbf16>
    %1 = vector.shape_cast %0 : vector<1x16x16x128xbf16> to vector<16x16x128xbf16>
    %2 = vector.shape_cast %1 : vector<16x16x128xbf16> to vector<256x128xbf16>
    %c0_3 = arith.constant 0 : index
    %c0_4 = arith.constant 0 : index
    %3 = vector.load %arg4[%c0_3, %c0_4] : memref<128x128xbf16, #tpu.memory_space<vmem>>, vector<128x128xbf16>
    %cst = arith.constant dense<0.000000e+00> : vector<256x128xf32>
    %4 = tpu.matmul %2, %3, %cst {dimension_numbers = #tpu.dot_dimension_numbers<[1], [0], [0], [1], [0, 0, 1, 1], [], []>} : vector<256x128xbf16>, vector<128x128xbf16>, vector<256x128xf32> -> vector<256x128xf32>
    %c0_5 = arith.constant 0 : index
    %c0_6 = arith.constant 0 : index
    %5 = vector.load %arg5[%c0_5, %c0_6] : memref<1x128xf32, #tpu.memory_space<vmem>>, vector<1x128xf32>
    %6 = vector.broadcast %5 : vector<1x128xf32> to vector<256x128xf32>
    %7 = arith.mulf %4, %6 : vector<256x128xf32>
    %c0_7 = arith.constant 0 : index
    %c0_8 = arith.constant 0 : index
    %8 = vector.load %arg6[%c0_7, %c0_8] : memref<1x128xf32, #tpu.memory_space<vmem>>, vector<1x128xf32>
    %9 = vector.broadcast %8 : vector<1x128xf32> to vector<256x128xf32>
    %10 = arith.addf %7, %9 : vector<256x128xf32>
    %cst_9 = arith.constant 0.000000e+00 : f32
    %11 = vector.broadcast %cst_9 : f32 to vector<256x128xf32>
    %12 = arith.maximumf %10, %11 : vector<256x128xf32>
    %13 = vector.shape_cast %12 : vector<256x128xf32> to vector<16x16x128xf32>
    %c0_10 = arith.constant 0 : index
    %c0_11 = arith.constant 0 : index
    %c0_12 = arith.constant 0 : index
    %c0_13 = arith.constant 0 : index
    %14 = vector.load %arg7[%c0_10, %c0_11, %c0_12, %c0_13] : memref<1x16x16x128xf32, #tpu.memory_space<vmem>>, vector<1x16x16x128xf32>
    %15 = vector.shape_cast %14 : vector<1x16x16x128xf32> to vector<16x16x128xf32>
    %16 = vector.shape_cast %13 : vector<16x16x128xf32> to vector<1x16x16x128xf32>
    tpu.vector_store %arg7[%c0_10, %c0_11, %c0_12, %c0_13], %16 {strides = array<i32>} : memref<1x16x16x128xf32, #tpu.memory_space<vmem>>, vector<1x16x16x128xf32>,
    return
  }
  func.func @transform_0(%arg0: i32, %arg1: i32, %arg2: i32) -> (i32, i32, i32, i32) {
    %c0_i32 = arith.constant 0 : i32
    %c0_i32_0 = arith.constant 0 : i32
    %c0_i32_1 = arith.constant 0 : i32
    return %arg0, %arg2, %c0_i32, %c0_i32_0 : i32, i32, i32, i32
  }
  func.func @transform_1(%arg0: i32, %arg1: i32, %arg2: i32) -> (i32, i32) {
    %c0_i32 = arith.constant 0 : i32
    %c0_i32_0 = arith.constant 0 : i32
    return %c0_i32, %arg1 : i32, i32
  }
  func.func @transform_2(%arg0: i32, %arg1: i32, %arg2: i32) -> (i32, i32) {
    %c0_i32 = arith.constant 0 : i32
    %c0_i32_0 = arith.constant 0 : i32
    return %c0_i32, %arg1 : i32, i32
  }
  func.func @transform_3(%arg0: i32, %arg1: i32, %arg2: i32) -> (i32, i32) {
    %c0_i32 = arith.constant 0 : i32
    %c0_i32_0 = arith.constant 0 : i32
    return %c0_i32, %arg1 : i32, i32
  }
  func.func @transform_4(%arg0: i32, %arg1: i32, %arg2: i32) -> (i32, i32, i32, i32) {
    %c0_i32 = arith.constant 0 : i32
    %c0_i32_0 = arith.constant 0 : i32
    return %arg0, %arg2, %c0_i32, %arg1 : i32, i32, i32, i32
  }
}

</mosaic_0001>

<llo_original>
// kernel: conv_bn_relu.1
$region0: #{conv_bn_relu.1}
  #allocation0 [shape = 'u32[]', space=smem, size = 0x4, offset = 0x4, fixed_abs, tag = 'smem constant byte address 0x4 - core index']
  #allocation1 [shape = 'u32[72,128]{1,0:T(1,128)}', space=vmem, size = 0x9000, scoped, tag = 'internal scratch']
  %s0 = inlined_call_operand.vmem [shape: bf16[2,16,16,128], index: 0, kind: input, shape index: {}]
  %s1 = inlined_call_operand.vmem [shape: bf16[128,128], index: 1, kind: input, shape index: {}]
  %s2 = inlined_call_operand.vmem [shape: f32[1,128], index: 2, kind: input, shape index: {}]
  %s3 = inlined_call_operand.vmem [shape: f32[1,128], index: 3, kind: input, shape index: {}]
  %s4 = inlined_call_operand.vmem [shape: f32[2,16,16,128], index: 4, kind: output, shape index: {}]
  %s5 = sld [smem:[#allocation0]]
  $region49: #{conv_bn_relu.1} parent=0
    _
  %s7 = ssub.s32 1, %s5
  %s8 = scalar_select 0, %s7, %s5
  loop: start=0, step=1, limit=4
  $region2: #{conv_bn_relu.1} parent=0 // loop_pre_header
    _
  $region3: #{conv_bn_relu.1} parent=0 // loop_header
    %s10 = sphi 0, %s14
    %p11 = scmp.ge.s32.totalorder %s10, 4
    %s17 = sphi 0, %s36
    %s18 = sphi 0, %s32
    %s19 = sphi 0, %s28
    %s20 = sphi 0, %s17
    %s21 = sphi 0, %s18
    %s22 = sphi 0, %s19
    %s23 = sphi 0, %s20
    %s24 = sphi 0, %s21
    %s25 = sphi 0, %s22
    %s41 = sphi 0, %s43
    %s44 = sphi 0, %s41
    %s45 = sphi 0, %s44
    %s61 = sphi 0, %s45
    %s67 = sphi 0, %s69
    %s70 = sphi 0, %s67
    %s71 = sphi 0, %s70
    %s87 = sphi 0, %s71
    %s93 = sphi 0, %s95
    %s96 = sphi 0, %s93
    %s97 = sphi 0, %s96
    %s113 = sphi 0, %s97
    %s119 = sphi 0, %s121
    %s122 = sphi 0, %s119
    %s123 = sphi 0, %s122
    %s139 = sphi 0, %s123
    %s149 = sphi 0, %s151
    %s152 = sphi 0, %s149
    %s153 = sphi 0, %s152
    %s169 = sphi 0, %s153
  $region4: #{conv_bn_relu.1} parent=0 // loop_header_branch
    %13 = sbr.rel (%p11) target = $region8
  $region5: #{conv_bn_relu.1} parent=0 // loop_body
    %s15 = ssub.s32 %s10, 1
    %s16 = ssub.s32 %s10, 2
    %s26 = sadd.s32 1, %s19
    %p27 = scmp.ge.s32.totalorder %s26, 1
    %s28 = scalar_select %p27, 0, %s26
    %s29 = sadd.s32 1, %s18
    %s30 = scalar_select %p27, %s29, %s18
    %p31 = scmp.ge.s32.totalorder %s30, 1
    %s32 = scalar_select %p31, 0, %s30
    %s33 = sadd.s32 1, %s17
    %s34 = scalar_select %p31, %s33, %s17
    %p35 = scmp.ge.s32.totalorder %s34, 2
    %s36 = scalar_select %p35, 0, %s34
    %s37 = ssub.s32 %s17, %s36
    %s38 = ssub.s32 %s19, %s28
    %s39 = sor.u32 %s37, %s38
    %p40 = scmp.eq.s32.totalorder %s39, 0
    %s42 = sadd.s32 %s41, 1
    %s43 = scalar_select %p40, %s41, %s42
    %p46 = pneg %p40
    %p47 = scmp.eq.s32.totalorder %s10, 1
    %p48 = por %p46, %p47
    %p49 = scmp.ne.s32.totalorder %s41, %s44
    %p50 = scmp.eq.s32.totalorder %s10, 0
    %p51 = por %p49, %p50
    %p52 = scmp.ne.s32.totalorder %s41, %s44
    %p53 = scmp.eq.s32.totalorder %s15, 1
    %p54 = por %p52, %p53
    %p55 = scmp.ne.s32.totalorder %s44, %s45
    %p56 = scmp.eq.s32.totalorder %s15, 0
    %p57 = por %p55, %p56
    %p58 = scmp.ne.s32.totalorder %s44, %s45
    %p59 = scmp.eq.s32.totalorder %s16, 1
    %p60 = por %p58, %p59
    %p62 = scmp.ne.s32.totalorder %s45, %s61
    %p63 = scmp.eq.s32.totalorder %s16, 0
    %p64 = por %p62, %p63
    %s65 = ssub.s32 %s18, %s32
    %p66 = scmp.eq.s32.totalorder %s65, 0
    %s68 = sadd.s32 %s67, 1
    %s69 = scalar_select %p66, %s67, %s68
    %p72 = pneg %p66
    %p73 = scmp.eq.s32.totalorder %s10, 1
    %p74 = por %p72, %p73
    %p75 = scmp.ne.s32.totalorder %s67, %s70
    %p76 = scmp.eq.s32.totalorder %s10, 0
    %p77 = por %p75, %p76
    %p78 = scmp.ne.s32.totalorder %s67, %s70
    %p79 = scmp.eq.s32.totalorder %s15, 1
    %p80 = por %p78, %p79
    %p81 = scmp.ne.s32.totalorder %s70, %s71
    %p82 = scmp.eq.s32.totalorder %s15, 0
    %p83 = por %p81, %p82
    %p84 = scmp.ne.s32.totalorder %s70, %s71
    %p85 = scmp.eq.s32.totalorder %s16, 1
    %p86 = por %p84, %p85
    %p88 = scmp.ne.s32.totalorder %s71, %s87
    %p89 = scmp.eq.s32.totalorder %s16, 0
    %p90 = por %p88, %p89
    %s91 = ssub.s32 %s18, %s32
    %p92 = scmp.eq.s32.totalorder %s91, 0
    %s94 = sadd.s32 %s93, 1
    %s95 = scalar_select %p92, %s93, %s94
    %p98 = pneg %p92
    %p99 = scmp.eq.s32.totalorder %s10, 1
    %p100 = por %p98, %p99
    %p101 = scmp.ne.s32.totalorder %s93, %s96
    %p102 = scmp.eq.s32.totalorder %s10, 0
    %p103 = por %p101, %p102
    %p104 = scmp.ne.s32.totalorder %s93, %s96
    %p105 = scmp.eq.s32.totalorder %s15, 1
    %p106 = por %p104, %p105
    %p107 = scmp.ne.s32.totalorder %s96, %s97
    %p108 = scmp.eq.s32.totalorder %s15, 0
    %p109 = por %p107, %p108
    %p110 = scmp.ne.s32.totalorder %s96, %s97
    %p111 = scmp.eq.s32.totalorder %s16, 1
    %p112 = por %p110, %p111
    %p114 = scmp.ne.s32.totalorder %s97, %s113
    %p115 = scmp.eq.s32.totalorder %s16, 0
    %p116 = por %p114, %p115
    %s117 = ssub.s32 %s18, %s32
    %p118 = scmp.eq.s32.totalorder %s117, 0
    %s120 = sadd.s32 %s119, 1
    %s121 = scalar_select %p118, %s119, %s120
    %p124 = pneg %p118
    %p125 = scmp.eq.s32.totalorder %s10, 1
    %p126 = por %p124, %p125
    %p127 = scmp.ne.s32.totalorder %s119, %s122
    %p128 = scmp.eq.s32.totalorder %s10, 0
    %p129 = por %p127, %p128
    %p130 = scmp.ne.s32.totalorder %s119, %s122
    %p131 = scmp.eq.s32.totalorder %s15, 1
    %p132 = por %p130, %p131
    %p133 = scmp.ne.s32.totalorder %s122, %s123
    %p134 = scmp.eq.s32.totalorder %s15, 0
    %p135 = por %p133, %p134
    %p136 = scmp.ne.s32.totalorder %s122, %s123
    %p137 = scmp.eq.s32.totalorder %s16, 1
    %p138 = por %p136, %p137
    %p140 = scmp.ne.s32.totalorder %s123, %s139
    %p141 = scmp.eq.s32.totalorder %s16, 0
    %p142 = por %p140, %p141
    %s143 = ssub.s32 %s17, %s36
    %s144 = ssub.s32 %s19, %s28
    %s145 = sor.u32 %s143, %s144
    %s146 = ssub.s32 %s18, %s32
    %s147 = sor.u32 %s145, %s146
    %p148 = scmp.eq.s32.totalorder %s147, 0
    %s150 = sadd.s32 %s149, 1
    %s151 = scalar_select %p148, %s149, %s150
    %p154 = pneg %p148
    %p155 = scmp.eq.s32.totalorder %s10, 1
    %p156 = por %p154, %p155
    %p157 = scmp.ne.s32.totalorder %s149, %s152
    %p158 = scmp.eq.s32.totalorder %s10, 0
    %p159 = por %p157, %p158
    %p160 = scmp.ne.s32.totalorder %s149, %s152
    %p161 = scmp.eq.s32.totalorder %s15, 1
    %p162 = por %p160, %p161
    %p163 = scmp.ne.s32.totalorder %s152, %s153
    %p164 = scmp.eq.s32.totalorder %s15, 0
    %p165 = por %p163, %p164
    %p166 = scmp.ne.s32.totalorder %s152, %s153
    %p167 = scmp.eq.s32.totalorder %s16, 1
    %p168 = por %p166, %p167
    %p170 = scmp.ne.s32.totalorder %s153, %s169
    %p171 = scmp.eq.s32.totalorder %s16, 0
    %p172 = por %p170, %p171
    %p173 = scmp.le.s32.totalorder 1, %s10
    %p174 = scmp.lt.s32.totalorder %s10, 3
    %p175 = pnand %p173, %p174
    %p176 = pneg %p175
    // Predicated region
    $region9: #{conv_bn_relu.1} parent=5 // pred_check
      _
    $region10: #{conv_bn_relu.1} parent=5 // pred_check_branch
      %178 = sbr.rel (%p175) target = $region12
    $region11: #{conv_bn_relu.1} parent=5 // pred_region
      %s179 = ssub.s32 %s10, 1
      // Predicated region
      $region13: #{conv_bn_relu.1} parent=11 // pred_check
        %p180 = pneg %p83
      $region14: #{conv_bn_relu.1} parent=11 // pred_check_branch
        %182 = sbr.rel (%p180) target = $region16
      $region15: #{conv_bn_relu.1} parent=11 // pred_region
        %p183 = scmp.lt.s32.totalorder %s21, 0
        %s184 = scalar_select %p183, %s21, 0
        %s185 = smul.addr %s184, 4
        %s186 = scalar_lea.vmem %s1, %s185
      $region16: #{conv_bn_relu.1} parent=11 // pred_fallthru
        _
      // Predicated region
      $region17: #{conv_bn_relu.1} parent=11 // pred_check
        %p187 = pneg %p109
      $region18: #{conv_bn_relu.1} parent=11 // pred_check_branch
        %189 = sbr.rel (%p187) target = $region20
      $region19: #{conv_bn_relu.1} parent=11 // pred_region
        %p190 = scmp.lt.s32.totalorder %s21, 0
        %s191 = scalar_select %p190, %s21, 0
        %s192 = scalar_lea.vmem %s2, %s191
      $region20: #{conv_bn_relu.1} parent=11 // pred_fallthru
        _
      // Predicated region
      $region21: #{conv_bn_relu.1} parent=11 // pred_check
        %p193 = pneg %p135
      $region22: #{conv_bn_relu.1} parent=11 // pred_check_branch
        %195 = sbr.rel (%p193) target = $region24
      $region23: #{conv_bn_relu.1} parent=11 // pred_region
        %p196 = scmp.lt.s32.totalorder %s21, 0
        %s197 = scalar_select %p196, %s21, 0
        %s198 = scalar_lea.vmem %s3, %s197
      $region24: #{conv_bn_relu.1} parent=11 // pred_fallthru
        _
    $region12: #{conv_bn_relu.1} parent=5 // pred_fallthru
      _
    %p199 = scmp.lt.s32.totalorder %s10, 2
    // Predicated region
    $region25: #{conv_bn_relu.1} parent=5 // pred_check
      %p200 = pneg %p199
    $region26: #{conv_bn_relu.1} parent=5 // pred_check_branch
      %202 = sbr.rel (%p200) target = $region28
    $region27: #{conv_bn_relu.1} parent=5 // pred_region
      // Predicated region
      $region29: #{conv_bn_relu.1} parent=27 // pred_check
        %p203 = pneg %p51
      $region30: #{conv_bn_relu.1} parent=27 // pred_check_branch
        %205 = sbr.rel (%p203) target = $region32
      $region31: #{conv_bn_relu.1} parent=27 // pred_region
        %s206 = smul.u32 16, %s19
        %p207 = scmp.lt.s32.totalorder %s17, 1
        %s208 = scalar_select %p207, %s17, 1
        %p209 = scmp.lt.s32.totalorder %s206, 15
        %s210 = scalar_select %p209, %s206, 15
        %s211 = smul.addr %s210, 2
        %s212 = smul.addr %s208, 32
        %s213 = sadd.s32 %s211, %s212
        %s214 = smul.addr %s213, 4
        %s215 = scalar_lea.vmem %s0, %s214
        %s216 = smul.u32 16, %s19
      $region32: #{conv_bn_relu.1} parent=27 // pred_fallthru
        _
    $region28: #{conv_bn_relu.1} parent=5 // pred_fallthru
      _
    %p217 = scmp.le.s32.totalorder 1, %s10
    %p218 = scmp.lt.s32.totalorder %s10, 3
    %p219 = pnand %p217, %p218
    %p220 = pneg %p219
    // Predicated region
    $region33: #{conv_bn_relu.1} parent=5 // pred_check
      _
    $region34: #{conv_bn_relu.1} parent=5 // pred_check_branch
      %222 = sbr.rel (%p219) target = $region36
    $region35: #{conv_bn_relu.1} parent=5 // pred_region
      %s223 = ssub.s32 %s10, 1
      %s224 = smul.u32 16, %s22
      %p225 = scmp.lt.s32.totalorder %s20, 1
      %s226 = scalar_select %p225, %s20, 1
      %p227 = scmp.lt.s32.totalorder %s224, 15
      %s228 = scalar_select %p227, %s224, 15
      %s229 = smul.addr %s228, 2
      %s230 = smul.addr %s226, 32
      %s231 = sadd.s32 %s229, %s230
      %s232 = smul.addr %s231, 4
      %s233 = scalar_lea.vmem %s0, %s232
      %p234 = pneg %p57
      %p235 = pneg %p54
      %p236 = scmp.lt.s32.totalorder %s21, 0
      %s237 = scalar_select %p236, %s21, 0
      %s238 = smul.addr %s237, 4
      %s239 = scalar_lea.vmem %s1, %s238
      %p240 = pneg %p83
      %p241 = pneg %p80
      %p242 = scmp.lt.s32.totalorder %s21, 0
      %s243 = scalar_select %p242, %s21, 0
      %s244 = scalar_lea.vmem %s2, %s243
      %p245 = pneg %p109
      %p246 = pneg %p106
      %p247 = scmp.lt.s32.totalorder %s21, 0
      %s248 = scalar_select %p247, %s21, 0
      %s249 = scalar_lea.vmem %s3, %s248
      %p250 = pneg %p135
      %p251 = pneg %p132
      %p252 = pneg %p165
      %p253 = pneg %p162
      %s254 = smul.u32 16, %s22
      %p255 = scmp.lt.s32.totalorder %s20, 1
      %s256 = scalar_select %p255, %s20, 1
      %p257 = scmp.lt.s32.totalorder %s254, 15
      %s258 = scalar_select %p257, %s254, 15
      %p259 = scmp.lt.s32.totalorder %s21, 0
      %s260 = scalar_select %p259, %s21, 0
      %s261 = smul.addr %s258, 2
      %s262 = sadd.s32 %s260, %s261
      %s263 = smul.addr %s256, 32
      %s264 = sadd.s32 %s262, %s263
      %s265 = smul.addr %s264, 8
      %s266 = scalar_lea.vmem %s4, %s265
      %s267 = smul.u32 16, %s22
      %p268 = scmp.lt.s32.totalorder %s20, 1
      %s269 = scalar_select %p268, %s20, 1
      %p270 = scmp.lt.s32.totalorder %s267, 15
      %s271 = scalar_select %p270, %s267, 15
      %s272 = smul.addr %s271, 2
      %s273 = smul.addr %s269, 32
      %s274 = sadd.s32 %s272, %s273
      %s275 = smul.addr %s274, 4
      %s276 = scalar_lea.vmem %s0, %s275
      %s277 = smul.u32 16, %s22
      %p278 = scmp.lt.s32.totalorder %s21, 0
      %s279 = scalar_select %p278, %s21, 0
      %s280 = smul.addr %s279, 4
      %s281 = scalar_lea.vmem %s1, %s280
      %p282 = scmp.lt.s32.totalorder %s21, 0
      %s283 = scalar_select %p282, %s21, 0
      %s284 = scalar_lea.vmem %s2, %s283
      %p285 = scmp.lt.s32.totalorder %s21, 0
      %s286 = scalar_select %p285, %s21, 0
      %s287 = scalar_lea.vmem %s3, %s286
      %s288 = smul.u32 16, %s22
      %p289 = scmp.lt.s32.totalorder %s20, 1
      %s290 = scalar_select %p289, %s20, 1
      %p291 = scmp.lt.s32.totalorder %s288, 15
      %s292 = scalar_select %p291, %s288, 15
      %p293 = scmp.lt.s32.totalorder %s21, 0
      %s294 = scalar_select %p293, %s21, 0
      %s295 = smul.addr %s292, 2
      %s296 = sadd.s32 %s294, %s295
      %s297 = smul.addr %s290, 32
      %s298 = sadd.s32 %s296, %s297
      %s299 = smul.addr %s298, 8
      %s300 = scalar_lea.vmem %s4, %s299
      %s301 = smul.u32 16, %s22
      %v302 = vld [vmem:[%s276] sm:$0xf]
      %v303 = vld [vmem:[%s276 + $0x4] sm:$0xf]
      %v304 = vld [vmem:[%s276 + $0x8] sm:$0xf]
      %v305 = vld [vmem:[%s276 + $0xc] sm:$0xf]
      %v306 = vld [vmem:[%s276 + $0x10] sm:$0xf]
      %v307 = vld [vmem:[%s276 + $0x14] sm:$0xf]
      %v308 = vld [vmem:[%s276 + $0x18] sm:$0xf]
      %v309 = vld [vmem:[%s276 + $0x1c] sm:$0xf]
      %v310 = vld [vmem:[%s276 + $0x20] sm:$0xf]
      %v311 = vld [vmem:[%s276 + $0x24] sm:$0xf]
      %v312 = vld [vmem:[%s276 + $0x28] sm:$0xf]
      %v313 = vld [vmem:[%s276 + $0x2c] sm:$0xf]
      %v314 = vld [vmem:[%s276 + $0x30] sm:$0xf]
      %v315 = vld [vmem:[%s276 + $0x34] sm:$0xf]
      %v316 = vld [vmem:[%s276 + $0x38] sm:$0xf]
      %v317 = vld [vmem:[%s276 + $0x3c] sm:$0xf]
      %v318 = vld [vmem:[%s276 + $0x40] sm:$0xf]
      %v319 = vld [vmem:[%s276 + $0x44] sm:$0xf]
      %v320 = vld [vmem:[%s276 + $0x48] sm:$0xf]
      %v321 = vld [vmem:[%s276 + $0x4c] sm:$0xf]
      %v322 = vld [vmem:[%s276 + $0x50] sm:$0xf]
      %v323 = vld [vmem:[%s276 + $0x54] sm:$0xf]
      %v324 = vld [vmem:[%s276 + $0x58] sm:$0xf]
      %v325 = vld [vmem:[%s276 + $0x5c] sm:$0xf]
      %v326 = vld [vmem:[%s276 + $0x60] sm:$0xf]
      %v327 = vld [vmem:[%s276 + $0x64] sm:$0xf]
      %v328 = vld [vmem:[%s276 + $0x68] sm:$0xf]
      %v329 = vld [vmem:[%s276 + $0x6c] sm:$0xf]
      %v330 = vld [vmem:[%s276 + $0x70] sm:$0xf]
      %v331 = vld [vmem:[%s276 + $0x74] sm:$0xf]
      %v332 = vld [vmem:[%s276 + $0x78] sm:$0xf]
      %v333 = vld [vmem:[%s276 + $0x7c] sm:$0xf]
      %v334 = vld [vmem:[%s281] sm:$0xf]
      %v335 = vld [vmem:[%s281 + $0x4] sm:$0xf]
      %v336 = vld [vmem:[%s281 + $0x8] sm:$0xf]
      %v337 = vld [vmem:[%s281 + $0xc] sm:$0xf]
      %v338 = vld [vmem:[%s281 + $0x10] sm:$0xf]
      %v339 = vld [vmem:[%s281 + $0x14] sm:$0xf]
      %v340 = vld [vmem:[%s281 + $0x18] sm:$0xf]
      %v341 = vld [vmem:[%s281 + $0x1c] sm:$0xf]
      %v342 = vld [vmem:[%s281 + $0x20] sm:$0xf]
      %v343 = vld [vmem:[%s281 + $0x24] sm:$0xf]
      %v344 = vld [vmem:[%s281 + $0x28] sm:$0xf]
      %v345 = vld [vmem:[%s281 + $0x2c] sm:$0xf]
      %v346 = vld [vmem:[%s281 + $0x30] sm:$0xf]
      %v347 = vld [vmem:[%s281 + $0x34] sm:$0xf]
      %v348 = vld [vmem:[%s281 + $0x38] sm:$0xf]
      %v349 = vld [vmem:[%s281 + $0x3c] sm:$0xf]
      %v382 = vunpack.c.l.b16 %v302
      %v383 = vunpack.c.l.b16 %v303
      %v384 = vunpack.c.l.b16 %v304
      %v385 = vunpack.c.l.b16 %v305
      %v386 = vunpack.c.l.b16 %v306
      %v387 = vunpack.c.l.b16 %v307
      %v388 = vunpack.c.l.b16 %v308
      %v389 = vunpack.c.l.b16 %v309
      %v390 = vunpack.c.l.b16 %v310
      %v391 = vunpack.c.l.b16 %v311
      %v392 = vunpack.c.l.b16 %v312
      %v393 = vunpack.c.l.b16 %v313
      %v394 = vunpack.c.l.b16 %v314
      %v395 = vunpack.c.l.b16 %v315
      %v396 = vunpack.c.l.b16 %v316
      %v397 = vunpack.c.l.b16 %v317
      %v398 = vunpack.c.l.b16 %v318
      %v399 = vunpack.c.l.b16 %v319
      %v400 = vunpack.c.l.b16 %v320
      %v401 = vunpack.c.l.b16 %v321
      %v402 = vunpack.c.l.b16 %v322
      %v403 = vunpack.c.l.b16 %v323
      %v404 = vunpack.c.l.b16 %v324
      %v405 = vunpack.c.l.b16 %v325
      %v406 = vunpack.c.l.b16 %v326
      %v407 = vunpack.c.l.b16 %v327
      %v408 = vunpack.c.l.b16 %v328
      %v409 = vunpack.c.l.b16 %v329
      %v410 = vunpack.c.l.b16 %v330
      %v411 = vunpack.c.l.b16 %v331
      %v412 = vunpack.c.l.b16 %v332
      %v413 = vunpack.c.l.b16 %v333
      %v414 = vpack.c.b16 %v383, %v382
      %v415 = vpack.c.b16 %v385, %v384
      %v416 = vpack.c.b16 %v387, %v386
      %v417 = vpack.c.b16 %v389, %v388
      %v418 = vpack.c.b16 %v391, %v390
      %v419 = vpack.c.b16 %v393, %v392
      %v420 = vpack.c.b16 %v395, %v394
      %v421 = vpack.c.b16 %v397, %v396
      %v422 = vpack.c.b16 %v399, %v398
      %v423 = vpack.c.b16 %v401, %v400
      %v424 = vpack.c.b16 %v403, %v402
      %v425 = vpack.c.b16 %v405, %v404
      %v426 = vpack.c.b16 %v407, %v406
      %v427 = vpack.c.b16 %v409, %v408
      %v428 = vpack.c.b16 %v411, %v410
      %v429 = vpack.c.b16 %v413, %v412
      %v462 = vunpack.c.l.b16 %v334
      %v463 = vunpack.c.l.b16 %v335
      %v464 = vunpack.c.l.b16 %v336
      %v465 = vunpack.c.l.b16 %v337
      %v466 = vunpack.c.l.b16 %v338
      %v467 = vunpack.c.l.b16 %v339
      %v468 = vunpack.c.l.b16 %v340
      %v469 = vunpack.c.l.b16 %v341
      %v470 = vunpack.c.l.b16 %v342
      %v471 = vunpack.c.l.b16 %v343
      %v472 = vunpack.c.l.b16 %v344
      %v473 = vunpack.c.l.b16 %v345
      %v474 = vunpack.c.l.b16 %v346
      %v475 = vunpack.c.l.b16 %v347
      %v476 = vunpack.c.l.b16 %v348
      %v477 = vunpack.c.l.b16 %v349
      %v478 = vpack.c.b16 %v463, %v462
      %v479 = vpack.c.b16 %v465, %v464
      %v480 = vpack.c.b16 %v467, %v466
      %v481 = vpack.c.b16 %v469, %v468
      %v482 = vpack.c.b16 %v471, %v470
      %v483 = vpack.c.b16 %v473, %v472
      %v484 = vpack.c.b16 %v475, %v474
      %v485 = vpack.c.b16 %v477, %v476
      %494 = vmatpush.bf16.msra.mxu0 %v485
      %495 = vmatpush.bf16.msra.mxu0 %v484
      %496 = vmatpush.bf16.msra.mxu0 %v483
      %497 = vmatpush.bf16.msra.mxu0 %v482
      %498 = vmatpush.bf16.msra.mxu0 %v481
      %499 = vmatpush.bf16.msra.mxu0 %v480
      %500 = vmatpush.bf16.msra.mxu0 %v479
      %501 = vmatpush.bf16.msra.mxu0 %v478
      %502 = vmatmul.bf16.gmra.mxu0 %v414
      %v503 = vpop.f32.mrf.mxu0
      %v504 = vadd.f32 0.0, %v503
      %v505 = vpop.f32.mrf.mxu0
      %v506 = vadd.f32 0.0, %v505
      %507 = vmatmul.bf16.gmra.mxu0 %v415
      %v508 = vpop.f32.mrf.mxu0
      %v509 = vadd.f32 0.0, %v508
      %v510 = vpop.f32.mrf.mxu0
      %v511 = vadd.f32 0.0, %v510
      %512 = vmatmul.bf16.gmra.mxu0 %v416
      %v513 = vpop.f32.mrf.mxu0
      %v514 = vadd.f32 0.0, %v513
      %v515 = vpop.f32.mrf.mxu0
      %v516 = vadd.f32 0.0, %v515
      %517 = vmatmul.bf16.gmra.mxu0 %v417
      %v518 = vpop.f32.mrf.mxu0
      %v519 = vadd.f32 0.0, %v518
      %v520 = vpop.f32.mrf.mxu0
      %v521 = vadd.f32 0.0, %v520
      %522 = vmatmul.bf16.gmra.mxu0 %v418
      %v523 = vpop.f32.mrf.mxu0
      %v524 = vadd.f32 0.0, %v523
      %v525 = vpop.f32.mrf.mxu0
      %v526 = vadd.f32 0.0, %v525
      %527 = vmatmul.bf16.gmra.mxu0 %v419
      %v528 = vpop.f32.mrf.mxu0
      %v529 = vadd.f32 0.0, %v528
      %v530 = vpop.f32.mrf.mxu0
      %v531 = vadd.f32 0.0, %v530
      %532 = vmatmul.bf16.gmra.mxu0 %v420
      %v533 = vpop.f32.mrf.mxu0
      %v534 = vadd.f32 0.0, %v533
      %v535 = vpop.f32.mrf.mxu0
      %v536 = vadd.f32 0.0, %v535
      %537 = vmatmul.bf16.gmra.mxu0 %v421
      %v538 = vpop.f32.mrf.mxu0
      %v539 = vadd.f32 0.0, %v538
      %v540 = vpop.f32.mrf.mxu0
      %v541 = vadd.f32 0.0, %v540
      %542 = vmatmul.bf16.gmra.mxu0 %v422
      %v543 = vpop.f32.mrf.mxu0
      %v544 = vadd.f32 0.0, %v543
      %v545 = vpop.f32.mrf.mxu0
      %v546 = vadd.f32 0.0, %v545
      %547 = vmatmul.bf16.gmra.mxu0 %v423
      %v548 = vpop.f32.mrf.mxu0
      %v549 = vadd.f32 0.0, %v548
      %v550 = vpop.f32.mrf.mxu0
      %v551 = vadd.f32 0.0, %v550
      %552 = vmatmul.bf16.gmra.mxu0 %v424
      %v553 = vpop.f32.mrf.mxu0
      %v554 = vadd.f32 0.0, %v553
      %v555 = vpop.f32.mrf.mxu0
      %v556 = vadd.f32 0.0, %v555
      %557 = vmatmul.bf16.gmra.mxu0 %v425
      %v558 = vpop.f32.mrf.mxu0
      %v559 = vadd.f32 0.0, %v558
      %v560 = vpop.f32.mrf.mxu0
      %v561 = vadd.f32 0.0, %v560
      %562 = vmatmul.bf16.gmra.mxu0 %v426
      %v563 = vpop.f32.mrf.mxu0
      %v564 = vadd.f32 0.0, %v563
      %v565 = vpop.f32.mrf.mxu0
      %v566 = vadd.f32 0.0, %v565
      %567 = vmatmul.bf16.gmra.mxu0 %v427
      %v568 = vpop.f32.mrf.mxu0
      %v569 = vadd.f32 0.0, %v568
      %v570 = vpop.f32.mrf.mxu0
      %v571 = vadd.f32 0.0, %v570
      %572 = vmatmul.bf16.gmra.mxu0 %v428
      %v573 = vpop.f32.mrf.mxu0
      %v574 = vadd.f32 0.0, %v573
      %v575 = vpop.f32.mrf.mxu0
      %v576 = vadd.f32 0.0, %v575
      %577 = vmatmul.bf16.gmra.mxu0 %v429
      %v578 = vpop.f32.mrf.mxu0
      %v579 = vadd.f32 0.0, %v578
      %v580 = vpop.f32.mrf.mxu0
      %v581 = vadd.f32 0.0, %v580
      %582 = vdwg.mxu0
      %v583 = vld [vmem:[%s284] sm:$0x1]
      %v585 = vperm.slane %v583, 0
      %v587 = vmul.f32 %v504, %v585
      %v588 = vmul.f32 %v506, %v585
      %v589 = vmul.f32 %v509, %v585
      %v590 = vmul.f32 %v511, %v585
      %v591 = vmul.f32 %v514, %v585
      %v592 = vmul.f32 %v516, %v585
      %v593 = vmul.f32 %v519, %v585
      %v594 = vmul.f32 %v521, %v585
      %v595 = vmul.f32 %v524, %v585
      %v596 = vmul.f32 %v526, %v585
      %v597 = vmul.f32 %v529, %v585
      %v598 = vmul.f32 %v531, %v585
      %v599 = vmul.f32 %v534, %v585
      %v600 = vmul.f32 %v536, %v585
      %v601 = vmul.f32 %v539, %v585
      %v602 = vmul.f32 %v541, %v585
      %v603 = vmul.f32 %v544, %v585
      %v604 = vmul.f32 %v546, %v585
      %v605 = vmul.f32 %v549, %v585
      %v606 = vmul.f32 %v551, %v585
      %v607 = vmul.f32 %v554, %v585
      %v608 = vmul.f32 %v556, %v585
      %v609 = vmul.f32 %v559, %v585
      %v610 = vmul.f32 %v561, %v585
      %v611 = vmul.f32 %v564, %v585
      %v612 = vmul.f32 %v566, %v585
      %v613 = vmul.f32 %v569, %v585
      %v614 = vmul.f32 %v571, %v585
      %v615 = vmul.f32 %v574, %v585
      %v616 = vmul.f32 %v576, %v585
      %v617 = vmul.f32 %v579, %v585
      %v618 = vmul.f32 %v581, %v585
      %v619 = vld [vmem:[%s287] sm:$0x1]
      %v621 = vperm.slane %v619, 0
      %v623 = vadd.f32 %v587, %v621
      %v624 = vadd.f32 %v588, %v621
      %v625 = vadd.f32 %v589, %v621
      %v626 = vadd.f32 %v590, %v621
      %v627 = vadd.f32 %v591, %v621
      %v628 = vadd.f32 %v592, %v621
      %v629 = vadd.f32 %v593, %v621
      %v630 = vadd.f32 %v594, %v621
      %v631 = vadd.f32 %v595, %v621
      %v632 = vadd.f32 %v596, %v621
      %v633 = vadd.f32 %v597, %v621
      %v634 = vadd.f32 %v598, %v621
      %v635 = vadd.f32 %v599, %v621
      %v636 = vadd.f32 %v600, %v621
      %v637 = vadd.f32 %v601, %v621
      %v638 = vadd.f32 %v602, %v621
      %v639 = vadd.f32 %v603, %v621
      %v640 = vadd.f32 %v604, %v621
      %v641 = vadd.f32 %v605, %v621
      %v642 = vadd.f32 %v606, %v621
      %v643 = vadd.f32 %v607, %v621
      %v644 = vadd.f32 %v608, %v621
      %v645 = vadd.f32 %v609, %v621
      %v646 = vadd.f32 %v610, %v621
      %v647 = vadd.f32 %v611, %v621
      %v648 = vadd.f32 %v612, %v621
      %v649 = vadd.f32 %v613, %v621
      %v650 = vadd.f32 %v614, %v621
      %v651 = vadd.f32 %v615, %v621
      %v652 = vadd.f32 %v616, %v621
      %v653 = vadd.f32 %v617, %v621
      %v654 = vadd.f32 %v618, %v621
      %v655 = vmax.f32 %v623, 0.0
      %v656 = vmax.f32 %v624, 0.0
      %v657 = vmax.f32 %v625, 0.0
      %v658 = vmax.f32 %v626, 0.0
      %v659 = vmax.f32 %v627, 0.0
      %v660 = vmax.f32 %v628, 0.0
      %v661 = vmax.f32 %v629, 0.0
      %v662 = vmax.f32 %v630, 0.0
      %v663 = vmax.f32 %v631, 0.0
      %v664 = vmax.f32 %v632, 0.0
      %v665 = vmax.f32 %v633, 0.0
      %v666 = vmax.f32 %v634, 0.0
      %v667 = vmax.f32 %v635, 0.0
      %v668 = vmax.f32 %v636, 0.0
      %v669 = vmax.f32 %v637, 0.0
      %v670 = vmax.f32 %v638, 0.0
      %v671 = vmax.f32 %v639, 0.0
      %v672 = vmax.f32 %v640, 0.0
      %v673 = vmax.f32 %v641, 0.0
      %v674 = vmax.f32 %v642, 0.0
      %v675 = vmax.f32 %v643, 0.0
      %v676 = vmax.f32 %v644, 0.0
      %v677 = vmax.f32 %v645, 0.0
      %v678 = vmax.f32 %v646, 0.0
      %v679 = vmax.f32 %v647, 0.0
      %v680 = vmax.f32 %v648, 0.0
      %v681 = vmax.f32 %v649, 0.0
      %v682 = vmax.f32 %v650, 0.0
      %v683 = vmax.f32 %v651, 0.0
      %v684 = vmax.f32 %v652, 0.0
      %v685 = vmax.f32 %v653, 0.0
      %v686 = vmax.f32 %v654, 0.0
      %687 = vst [vmem:[%s300] sm:$0xff] %v655
      %688 = vst [vmem:[%s300 + $0x8] sm:$0xff] %v656
      %689 = vst [vmem:[%s300 + $0x10] sm:$0xff] %v657
      %690 = vst [vmem:[%s300 + $0x18] sm:$0xff] %v658
      %691 = vst [vmem:[%s300 + $0x20] sm:$0xff] %v659
      %692 = vst [vmem:[%s300 + $0x28] sm:$0xff] %v660
      %693 = vst [vmem:[%s300 + $0x30] sm:$0xff] %v661
      %694 = vst [vmem:[%s300 + $0x38] sm:$0xff] %v662
      %695 = vst [vmem:[%s300 + $0x40] sm:$0xff] %v663
      %696 = vst [vmem:[%s300 + $0x48] sm:$0xff] %v664
      %697 = vst [vmem:[%s300 + $0x50] sm:$0xff] %v665
      %698 = vst [vmem:[%s300 + $0x58] sm:$0xff] %v666
      %699 = vst [vmem:[%s300 + $0x60] sm:$0xff] %v667
      %700 = vst [vmem:[%s300 + $0x68] sm:$0xff] %v668
      %701 = vst [vmem:[%s300 + $0x70] sm:$0xff] %v669
      %702 = vst [vmem:[%s300 + $0x78] sm:$0xff] %v670
      %703 = vst [vmem:[%s300 + $0x80] sm:$0xff] %v671
      %704 = vst [vmem:[%s300 + $0x88] sm:$0xff] %v672
      %705 = vst [vmem:[%s300 + $0x90] sm:$0xff] %v673
      %706 = vst [vmem:[%s300 + $0x98] sm:$0xff] %v674
      %707 = vst [vmem:[%s300 + $0xa0] sm:$0xff] %v675
      %708 = vst [vmem:[%s300 + $0xa8] sm:$0xff] %v676
      %709 = vst [vmem:[%s300 + $0xb0] sm:$0xff] %v677
      %710 = vst [vmem:[%s300 + $0xb8] sm:$0xff] %v678
      %711 = vst [vmem:[%s300 + $0xc0] sm:$0xff] %v679
      %712 = vst [vmem:[%s300 + $0xc8] sm:$0xff] %v680
      %713 = vst [vmem:[%s300 + $0xd0] sm:$0xff] %v681
      %714 = vst [vmem:[%s300 + $0xd8] sm:$0xff] %v682
      %715 = vst [vmem:[%s300 + $0xe0] sm:$0xff] %v683
      %716 = vst [vmem:[%s300 + $0xe8] sm:$0xff] %v684
      %717 = vst [vmem:[%s300 + $0xf0] sm:$0xff] %v685
      %718 = vst [vmem:[%s300 + $0xf8] sm:$0xff] %v686
      %s719 = smul.u32 16, %s22
      %p720 = scmp.lt.s32.totalorder %s20, 1
      %s721 = scalar_select %p720, %s20, 1
      %p722 = scmp.lt.s32.totalorder %s719, 15
      %s723 = scalar_select %p722, %s719, 15
      %p724 = scmp.lt.s32.totalorder %s21, 0
      %s725 = scalar_select %p724, %s21, 0
      %s726 = smul.addr %s723, 2
      %s727 = sadd.s32 %s725, %s726
      %s728 = smul.addr %s721, 32
      %s729 = sadd.s32 %s727, %s728
      %s730 = smul.addr %s729, 8
      %s731 = scalar_lea.vmem %s4, %s730
      // Predicated region
      $region37: #{conv_bn_relu.1} parent=35 // pred_check
        %p732 = pneg %p162
      $region38: #{conv_bn_relu.1} parent=35 // pred_check_branch
        %734 = sbr.rel (%p732) target = $region40
      $region39: #{conv_bn_relu.1} parent=35 // pred_region
        %s735 = smul.u32 16, %s22
      $region40: #{conv_bn_relu.1} parent=35 // pred_fallthru
        _
    $region36: #{conv_bn_relu.1} parent=5 // pred_fallthru
      _
    %p736 = scmp.le.s32.totalorder 2, %s10
    // Predicated region
    $region41: #{conv_bn_relu.1} parent=5 // pred_check
      %p737 = pneg %p736
    $region42: #{conv_bn_relu.1} parent=5 // pred_check_branch
      %739 = sbr.rel (%p737) target = $region44
    $region43: #{conv_bn_relu.1} parent=5 // pred_region
      %s740 = ssub.s32 %s10, 2
      // Predicated region
      $region45: #{conv_bn_relu.1} parent=43 // pred_check
        %p741 = pneg %p168
      $region46: #{conv_bn_relu.1} parent=43 // pred_check_branch
        %743 = sbr.rel (%p741) target = $region48
      $region47: #{conv_bn_relu.1} parent=43 // pred_region
        %s744 = smul.u32 16, %s25
        %p745 = scmp.lt.s32.totalorder %s23, 1
        %s746 = scalar_select %p745, %s23, 1
        %p747 = scmp.lt.s32.totalorder %s744, 15
        %s748 = scalar_select %p747, %s744, 15
        %p749 = scmp.lt.s32.totalorder %s24, 0
        %s750 = scalar_select %p749, %s24, 0
        %s751 = smul.addr %s748, 2
        %s752 = sadd.s32 %s750, %s751
        %s753 = smul.addr %s746, 32
        %s754 = sadd.s32 %s752, %s753
        %s755 = smul.addr %s754, 8
        %s756 = scalar_lea.vmem %s4, %s755
      $region48: #{conv_bn_relu.1} parent=43 // pred_fallthru
        _
    $region44: #{conv_bn_relu.1} parent=5 // pred_fallthru
      _
  $region6: #{conv_bn_relu.1} parent=0 // loop_footer
    %s14 = sadd.s32 1, %s10
  $region7: #{conv_bn_relu.1} parent=0 // loop_footer_branch
    %9 = sbr.rel target = $region3
  $region8: #{conv_bn_relu.1} parent=0 // loop_exit
    _

</llo_original>
